<compile_context>
chip_gen: v6e
topology: v6e:2x2x1
jax: 0.10.0
libtpu: 0.0.40
codegen_flags: <defaults>
</compile_context>

<pallas_src>
import jax
import jax.numpy as jnp
from jax import lax
from jax.experimental import pallas as pl
from jax.experimental.pallas import tpu as pltpu


NEG_SLOPE = 0.01


def _leaky_relu(x):
    return jnp.where(x > 0, x, NEG_SLOPE * x)


def _make_transfer_kernel(tb, row_chunk, compute_dtype):
    """Fused 2x(Linear + LeakyReLU) over a (tb, D) batch tile."""
    n_chunks = tb // row_chunk

    def mlp_rows(x, w1t, w2t, out_dtype):
        if compute_dtype is not None:
            x = x.astype(compute_dtype)          # in-kernel cast: no extra HBM pass
        h = jnp.dot(x, w1t, preferred_element_type=jnp.float32)
        h = _leaky_relu(h)
        h = h.astype(w2t.dtype)                  # keep MXU on its native dtype
        y = jnp.dot(h, w2t, preferred_element_type=jnp.float32)
        y = _leaky_relu(y)
        return y.astype(out_dtype)

    def kernel(x_ref, w1t_ref, w2t_ref, o_ref):
        w1t = w1t_ref[...]
        w2t = w2t_ref[...]
        if n_chunks == 1:
            o_ref[...] = mlp_rows(x_ref[...], w1t, w2t, o_ref.dtype)
        else:
            # Rolled loop over row sub-chunks; the intermediates are staged in
            # VMEM either way, so no full unroll (keeps bundles/compile small).
            def body(c, carry):
                r = pl.multiple_of(c * row_chunk, row_chunk)
                o_ref[pl.ds(r, row_chunk), :] = mlp_rows(
                    x_ref[pl.ds(r, row_chunk), :], w1t, w2t, o_ref.dtype)
                return carry

            lax.fori_loop(0, n_chunks, body, 0, unroll=False)

    return kernel


def transfer_forward(x, w1, w2, *, tb=4096, row_chunk=256, compute_dtype=None,
                     min_steps=8, min_tile_rows=256, x_buffers=2):
    """Fused forward of `transfer` (linear, depth=2, bias=False).

    x:  (B, D)  activations.
    w1, w2: (D, D) PyTorch (out_features, in_features) weights.
    compute_dtype: e.g. jnp.bfloat16 — matmul operands are cast *inside* the
        kernel (accumulation stays f32, output dtype == input dtype).  Worth
        the most on v5e (lowest HBM BW) when activations are stored bf16
        upstream; on v6e/v7x it puts the MXU on its native bf16 path.
    x_buffers: pipeline depth for the streamed x/out tiles (3 can help v7x).
    """
    B, D = x.shape
    assert w1.shape == (D, D) and w2.shape == (D, D)
    out_dtype = x.dtype

    # Weights are tiny (D*D); transpose + optional cast once outside the kernel.
    w_dtype = compute_dtype if compute_dtype is not None else w1.dtype
    w1t = w1.T.astype(w_dtype)
    w2t = w2.T.astype(w_dtype)

    # --- batch tile selection ---------------------------------------------
    itemsize = jnp.dtype(out_dtype).itemsize
    align = 16 if itemsize <= 2 else 8           # bf16 packs 2 rows / sublane
    tb = min(tb, B)
    # Keep enough grid steps to feed both v7x TensorCores / the pipeline,
    # but never shrink a tile below min_tile_rows (per-step overhead floor).
    if B >= min_steps * min_tile_rows:
        tb = min(tb, max(min_tile_rows, B // min_steps))
    if tb < B:                                   # full-batch block is always legal
        tb = max(align, (tb // align) * align)
    rc = row_chunk if (tb > row_chunk and tb % row_chunk == 0) else tb

    grid = (pl.cdiv(B, tb),)  # ragged last tile: Pallas masks the OOB writes

    # --- VMEM budget derived from the chosen tiling -------------------------
    n_buf = max(2, x_buffers)
    tile_bytes = tb * D * itemsize
    w_bytes = 2 * D * D * jnp.dtype(w_dtype).itemsize
    vmem_bytes = n_buf * tile_bytes * 2 + 2 * w_bytes + (4 << 20)  # + headroom
    vmem_bytes = min(max(vmem_bytes, 16 << 20), 64 << 20)

    cost = pl.CostEstimate(
        flops=4 * B * D * D,                                   # two (B,D)@(D,D)
        transcendentals=0,
        bytes_accessed=2 * B * D * itemsize + w_bytes,         # x, out, weights
    )

    spec_kwargs = {}
    if x_buffers > 2:
        spec_kwargs = dict(pipeline_mode=pl.Buffered(x_buffers))
    x_spec = pl.BlockSpec((tb, D), lambda i: (i, 0), **spec_kwargs)
    o_spec = pl.BlockSpec((tb, D), lambda i: (i, 0), **spec_kwargs)

    return pl.pallas_call(
        _make_transfer_kernel(tb, rc, compute_dtype),
        out_shape=jax.ShapeDtypeStruct((B, D), out_dtype),
        grid_spec=pltpu.PrefetchScalarGridSpec(
            num_scalar_prefetch=0,
            grid=grid,
            in_specs=[
                x_spec,                                   # x tile (streamed)
                pl.BlockSpec((D, D), lambda i: (0, 0)),   # w1^T (resident)
                pl.BlockSpec((D, D), lambda i: (0, 0)),   # w2^T (resident)
            ],
            out_specs=o_spec,
        ),
        compiler_params=pltpu.CompilerParams(
            dimension_semantics=("parallel",),   # megacore-shard the batch
            vmem_limit_bytes=vmem_bytes,
        ),
        cost_estimate=cost,
    )(x, w1t, w2t)


def transfer_reference(x, w1, w2):
    h = _leaky_relu(x @ w1.T)
    return _leaky_relu(h @ w2.T)


if __name__ == "__main__":
    key = jax.random.PRNGKey(0)
    k_x, k_w1, k_w2, k_xb, k_xg = jax.random.split(key, 5)

    D = 128  # input_size: lane-aligned (also the module's conv_dim default)

    # Deterministic init mimicking nn.Linear's uniform(-1/sqrt(D), 1/sqrt(D)).
    bound = 1.0 / jnp.sqrt(jnp.float32(D))
    w1 = jax.random.uniform(k_w1, (D, D), minval=-bound, maxval=bound,
                            dtype=jnp.float32)
    w2 = jax.random.uniform(k_w2, (D, D), minval=-bound, maxval=bound,
                            dtype=jnp.float32)

    # --- Check 1: small batch, f32 (single full-batch tile) ---
    x_small = jax.random.normal(k_x, (8, D), dtype=jnp.float32)
    out = jax.block_until_ready(transfer_forward(x_small, w1, w2))
    ref = transfer_reference(x_small, w1, w2)
    assert out.shape == (8, D) and out.dtype == jnp.float32
    assert jnp.allclose(out, ref, atol=1e-5, rtol=1e-5), "f32 small mismatch"

    # --- Check 2: ragged batch, f32 (single tile spanning the full batch) ---
    x_big = jax.random.normal(k_xb, (1040, D), dtype=jnp.float32)
    out_big = jax.block_until_ready(transfer_forward(x_big, w1, w2))
    ref_big = transfer_reference(x_big, w1, w2)
    assert out_big.shape == (1040, D)
    assert jnp.allclose(out_big, ref_big, atol=1e-4, rtol=1e-4), "f32 big mismatch"

    # --- Check 3: multi-step grid (min_steps split + row chunking) ---
    x_grid = jax.random.normal(k_xg, (4096, D), dtype=jnp.float32)
    out_grid = jax.block_until_ready(transfer_forward(x_grid, w1, w2))
    ref_grid = transfer_reference(x_grid, w1, w2)
    assert jnp.allclose(out_grid, ref_grid, atol=1e-4, rtol=1e-4), "grid mismatch"

    # --- Check 4: bf16 matmul operands (in-kernel cast), f32 output preserved ---
    out_bf = jax.block_until_ready(
        transfer_forward(x_grid, w1, w2, compute_dtype=jnp.bfloat16))
    assert out_bf.dtype == jnp.float32
    assert jnp.allclose(out_bf, ref_grid, atol=5e-2, rtol=5e-2), "bf16 mismatch"

    print("KERNEL_OK")
</pallas_src>

<mosaic_0001>
module attributes {stable_mosaic.version = 11 : i64} {
  func.func @kernel(%arg0: i32, %arg1: memref<8x128xf32, #tpu.memory_space<vmem>>, %arg2: memref<128x128xf32, #tpu.memory_space<vmem>>, %arg3: memref<128x128xf32, #tpu.memory_space<vmem>>, %arg4: memref<8x128xf32, #tpu.memory_space<vmem>>) attributes {dimension_semantics = [#tpu.dimension_semantics<parallel>], iteration_bounds = array<i64: 1>, scalar_prefetch = 0 : i64, scratch_operands = 0 : i64, tpu.core_type = #tpu.core_type<tc>, window_params = [{transform_indices = @transform_0, window_bounds = array<i64: 8, 128>}, {pipeline_mode = #tpu.pipeline_mode<synchronous>, transform_indices = @transform_1, window_bounds = array<i64: 128, 128>}, {pipeline_mode = #tpu.pipeline_mode<synchronous>, transform_indices = @transform_2, window_bounds = array<i64: 128, 128>}, {transform_indices = @transform_3, window_bounds = array<i64: 8, 128>}]} {
    %c0 = arith.constant 0 : index
    %c0_0 = arith.constant 0 : index
    %0 = vector.load %arg2[%c0, %c0_0] : memref<128x128xf32, #tpu.memory_space<vmem>>, vector<128x128xf32>
    %c0_1 = arith.constant 0 : index
    %c0_2 = arith.constant 0 : index
    %1 = vector.load %arg3[%c0_1, %c0_2] : memref<128x128xf32, #tpu.memory_space<vmem>>, vector<128x128xf32>
    %c0_3 = arith.constant 0 : index
    %c0_4 = arith.constant 0 : index
    %2 = vector.load %arg1[%c0_3, %c0_4] : memref<8x128xf32, #tpu.memory_space<vmem>>, vector<8x128xf32>
    %cst = arith.constant dense<0.000000e+00> : vector<8x128xf32>
    %3 = tpu.matmul %2, %0, %cst {dimension_numbers = #tpu.dot_dimension_numbers<[1], [0], [0], [1], [0, 0, 1, 1], [], []>} : vector<8x128xf32>, vector<128x128xf32>, vector<8x128xf32> -> vector<8x128xf32>
    %cst_5 = arith.constant 0.000000e+00 : f32
    %4 = vector.broadcast %cst_5 : f32 to vector<8x128xf32>
    %5 = arith.cmpf ogt, %3, %4 : vector<8x128xf32>
    %cst_6 = arith.constant 0.00999999977 : f32
    %6 = vector.broadcast %cst_6 : f32 to vector<8x128xf32>
    %7 = arith.mulf %6, %3 : vector<8x128xf32>
    %8 = arith.select %5, %3, %7 : vector<8x128xi1>, vector<8x128xf32>
    %cst_7 = arith.constant dense<0.000000e+00> : vector<8x128xf32>
    %9 = tpu.matmul %8, %1, %cst_7 {dimension_numbers = #tpu.dot_dimension_numbers<[1], [0], [0], [1], [0, 0, 1, 1], [], []>} : vector<8x128xf32>, vector<128x128xf32>, vector<8x128xf32> -> vector<8x128xf32>
    %cst_8 = arith.constant 0.000000e+00 : f32
    %10 = vector.broadcast %cst_8 : f32 to vector<8x128xf32>
    %11 = arith.cmpf ogt, %9, %10 : vector<8x128xf32>
    %cst_9 = arith.constant 0.00999999977 : f32
    %12 = vector.broadcast %cst_9 : f32 to vector<8x128xf32>
    %13 = arith.mulf %12, %9 : vector<8x128xf32>
    %14 = arith.select %11, %9, %13 : vector<8x128xi1>, vector<8x128xf32>
    %c0_10 = arith.constant 0 : index
    %c0_11 = arith.constant 0 : index
    %15 = vector.load %arg4[%c0_10, %c0_11] : memref<8x128xf32, #tpu.memory_space<vmem>>, vector<8x128xf32>
    tpu.vector_store %arg4[%c0_10, %c0_11], %14 {strides = array<i32>} : memref<8x128xf32, #tpu.memory_space<vmem>>, vector<8x128xf32>,
    return
  }
  func.func @transform_0(%arg0: i32) -> (i32, i32) {
    %c0_i32 = arith.constant 0 : i32
    %c0_i32_0 = arith.constant 0 : i32
    return %arg0, %c0_i32 : i32, i32
  }
  func.func @transform_1(%arg0: i32) -> (i32, i32) {
    %c0_i32 = arith.constant 0 : i32
    %c0_i32_0 = arith.constant 0 : i32
    %c0_i32_1 = arith.constant 0 : i32
    return %c0_i32, %c0_i32_0 : i32, i32
  }
  func.func @transform_2(%arg0: i32) -> (i32, i32) {
    %c0_i32 = arith.constant 0 : i32
    %c0_i32_0 = arith.constant 0 : i32
    %c0_i32_1 = arith.constant 0 : i32
    return %c0_i32, %c0_i32_0 : i32, i32
  }
  func.func @transform_3(%arg0: i32) -> (i32, i32) {
    %c0_i32 = arith.constant 0 : i32
    %c0_i32_0 = arith.constant 0 : i32
    return %arg0, %c0_i32 : i32, i32
  }
}

</mosaic_0001>

<llo_original>
// kernel: tpu_custom_call.1
$region0: #{tpu_custom_call.1}
  #allocation0 [shape = 'u32[]', space=smem, size = 0x4, offset = 0x4, fixed_abs, tag = 'smem constant byte address 0x4 - core index']
  #allocation1 [shape = 'u32[144,128]{1,0:T(1,128)}', space=vmem, size = 0x12000, scoped, tag = 'internal scratch']
  %s0 = inlined_call_operand.hbm [shape: f32[8,128], index: 0, kind: input, shape index: {}]
  %s1 = inlined_call_operand.hbm [shape: f32[128,128], index: 1, kind: input, shape index: {}]
  %s2 = inlined_call_operand.hbm [shape: f32[128,128], index: 2, kind: input, shape index: {}]
  %s3 = inlined_call_operand.hbm [shape: f32[8,128], index: 3, kind: output, shape index: {}]
  %s4 = sld [smem:[#allocation0]]
  $region34: #{tpu_custom_call.1} parent=0
    _
  %s6 = ssub.s32 1, %s4
  %s7 = scalar_select 0, %s6, %s4
  $region1: #{tpu_custom_call.1} parent=0
    #allocation2 [shape = 'u8[4096]{0}', space=vmem, size = 0x1000, scoped, tag = 'input window, operand 0, single buffered']
    #allocation3 [shape = 's32[1]{0}', space=sflag, size = 0x4, scoped, tag = 'scoped memory for tpu_custom_call.1']
    #allocation4 [shape = 's32[1]{0}', space=sflag, size = 0x4, scoped, tag = 'scoped memory for tpu_custom_call.1']
    #allocation5 [shape = 'u8[65536]{0}', space=vmem, size = 0x10000, scoped, tag = 'input window, operand 1, single buffered']
    #allocation6 [shape = 's32[1]{0}', space=sflag, size = 0x4, scoped, tag = 'scoped memory for tpu_custom_call.1']
    #allocation7 [shape = 'u8[65536]{0}', space=vmem, size = 0x10000, scoped, tag = 'input window, operand 2, single buffered']
    #allocation8 [shape = 'u8[4096]{0}', space=vmem, size = 0x1000, scoped, tag = 'output window, operand 0, single buffered']
    %8 = vsyncpa [#allocation3], 0
    %9 = vsyncpa [#allocation6], 0
    %10 = vsyncpa [#allocation4], 0
    // Predicated region
    $region2: #{tpu_custom_call.1} parent=1 // pred_check
      _
    $region3: #{tpu_custom_call.1} parent=1 // pred_check_branch
      %12 = sbr.rel (0) target = $region5
    $region4: #{tpu_custom_call.1} parent=1 // pred_region
      %s14 = ssub.s32 128, 128
      %15 = vsyncadd [#allocation3], %s14
      %s17 = sshll.u32 [#allocation2], 4
      %s18 = int_to_ptr.vmem [resolvable:$true] %s17
      %20 = dma.hbm_to_vmem [thread:$0]  %s0, 128, %s18, [#allocation3]
    $region5: #{tpu_custom_call.1} parent=1 // pred_fallthru
      _
    // Predicated region
    $region6: #{tpu_custom_call.1} parent=1 // pred_check
      _
    $region7: #{tpu_custom_call.1} parent=1 // pred_check_branch
      %22 = sbr.rel (0) target = $region9
    $region8: #{tpu_custom_call.1} parent=1 // pred_region
      %s24 = ssub.s32 2048, 2048
      %25 = vsyncadd [#allocation6], %s24
      %s26 = sshll.u32 [#allocation5], 4
      %s27 = int_to_ptr.vmem [resolvable:$true] %s26
      %32 = dma.hbm_to_vmem [thread:$0]  %s1, 2048, %s27, [#allocation6], 128, 128, 8
    $region9: #{tpu_custom_call.1} parent=1 // pred_fallthru
      _
    // Predicated region
    $region10: #{tpu_custom_call.1} parent=1 // pred_check
      _
    $region11: #{tpu_custom_call.1} parent=1 // pred_check_branch
      %34 = sbr.rel (0) target = $region13
    $region12: #{tpu_custom_call.1} parent=1 // pred_region
      %s36 = ssub.s32 2048, 2048
      %37 = vsyncadd [#allocation6], %s36
      %s38 = sshll.u32 [#allocation7], 4
      %s39 = int_to_ptr.vmem [resolvable:$true] %s38
      %44 = dma.hbm_to_vmem [thread:$0]  %s2, 2048, %s39, [#allocation6], 128, 128, 8
    $region13: #{tpu_custom_call.1} parent=1 // pred_fallthru
      _
    // Predicated region
    $region14: #{tpu_custom_call.1} parent=1 // pred_check
      _
    $region15: #{tpu_custom_call.1} parent=1 // pred_check_branch
      %46 = sbr.rel (0) target = $region17
    $region16: #{tpu_custom_call.1} parent=1 // pred_region
      %47 = dma.done [#allocation3], 128
    $region17: #{tpu_custom_call.1} parent=1 // pred_fallthru
      _
    // Predicated region
    $region18: #{tpu_custom_call.1} parent=1 // pred_check
      _
    $region19: #{tpu_custom_call.1} parent=1 // pred_check_branch
      %49 = sbr.rel (0) target = $region21
    $region20: #{tpu_custom_call.1} parent=1 // pred_region
      %50 = dma.done [#allocation6], 2048
    $region21: #{tpu_custom_call.1} parent=1 // pred_fallthru
      _
    // Predicated region
    $region22: #{tpu_custom_call.1} parent=1 // pred_check
      _
    $region23: #{tpu_custom_call.1} parent=1 // pred_check_branch
      %52 = sbr.rel (0) target = $region25
    $region24: #{tpu_custom_call.1} parent=1 // pred_region
      %53 = dma.done [#allocation6], 2048
    $region25: #{tpu_custom_call.1} parent=1 // pred_fallthru
      _
    %v54 = vld [vmem:[#allocation5] sm:$0xff]
    %v55 = vld [vmem:[#allocation5 + $0x8] sm:$0xff]
    %v56 = vld [vmem:[#allocation5 + $0x10] sm:$0xff]
    %v57 = vld [vmem:[#allocation5 + $0x18] sm:$0xff]
    %v58 = vld [vmem:[#allocation5 + $0x20] sm:$0xff]
    %v59 = vld [vmem:[#allocation5 + $0x28] sm:$0xff]
    %v60 = vld [vmem:[#allocation5 + $0x30] sm:$0xff]
    %v61 = vld [vmem:[#allocation5 + $0x38] sm:$0xff]
    %v62 = vld [vmem:[#allocation5 + $0x40] sm:$0xff]
    %v63 = vld [vmem:[#allocation5 + $0x48] sm:$0xff]
    %v64 = vld [vmem:[#allocation5 + $0x50] sm:$0xff]
    %v65 = vld [vmem:[#allocation5 + $0x58] sm:$0xff]
    %v66 = vld [vmem:[#allocation5 + $0x60] sm:$0xff]
    %v67 = vld [vmem:[#allocation5 + $0x68] sm:$0xff]
    %v68 = vld [vmem:[#allocation5 + $0x70] sm:$0xff]
    %v69 = vld [vmem:[#allocation5 + $0x78] sm:$0xff]
    %v70 = vld [vmem:[#allocation7] sm:$0xff]
    %v71 = vld [vmem:[#allocation7 + $0x8] sm:$0xff]
    %v72 = vld [vmem:[#allocation7 + $0x10] sm:$0xff]
    %v73 = vld [vmem:[#allocation7 + $0x18] sm:$0xff]
    %v74 = vld [vmem:[#allocation7 + $0x20] sm:$0xff]
    %v75 = vld [vmem:[#allocation7 + $0x28] sm:$0xff]
    %v76 = vld [vmem:[#allocation7 + $0x30] sm:$0xff]
    %v77 = vld [vmem:[#allocation7 + $0x38] sm:$0xff]
    %v78 = vld [vmem:[#allocation7 + $0x40] sm:$0xff]
    %v79 = vld [vmem:[#allocation7 + $0x48] sm:$0xff]
    %v80 = vld [vmem:[#allocation7 + $0x50] sm:$0xff]
    %v81 = vld [vmem:[#allocation7 + $0x58] sm:$0xff]
    %v82 = vld [vmem:[#allocation7 + $0x60] sm:$0xff]
    %v83 = vld [vmem:[#allocation7 + $0x68] sm:$0xff]
    %v84 = vld [vmem:[#allocation7 + $0x70] sm:$0xff]
    %v85 = vld [vmem:[#allocation7 + $0x78] sm:$0xff]
    %v86 = vld [vmem:[#allocation2] sm:$0xff]
    %87 = vmatprep.subr.mxu0 0.0
    %88 = vmatpush1.msra.mxu0 %v69
    %89 = vmatprep.subr.mxu0 0.0
    %90 = vmatpush1.msra.mxu0 %v68
    %91 = vmatprep.subr.mxu0 0.0
    %92 = vmatpush1.msra.mxu0 %v67
    %93 = vmatprep.subr.mxu0 0.0
    %94 = vmatpush1.msra.mxu0 %v66
    %95 = vmatprep.subr.mxu0 0.0
    %96 = vmatpush1.msra.mxu0 %v65
    %97 = vmatprep.subr.mxu0 0.0
    %98 = vmatpush1.msra.mxu0 %v64
    %99 = vmatprep.subr.mxu0 0.0
    %100 = vmatpush1.msra.mxu0 %v63
    %101 = vmatprep.subr.mxu0 0.0
    %102 = vmatpush1.msra.mxu0 %v62
    %103 = vmatprep.subr.mxu0 0.0
    %104 = vmatpush1.msra.mxu0 %v61
    %105 = vmatprep.subr.mxu0 0.0
    %106 = vmatpush1.msra.mxu0 %v60
    %107 = vmatprep.subr.mxu0 0.0
    %108 = vmatpush1.msra.mxu0 %v59
    %109 = vmatprep.subr.mxu0 0.0
    %110 = vmatpush1.msra.mxu0 %v58
    %111 = vmatprep.subr.mxu0 0.0
    %112 = vmatpush1.msra.mxu0 %v57
    %113 = vmatprep.subr.mxu0 0.0
    %114 = vmatpush1.msra.mxu0 %v56
    %115 = vmatprep.subr.mxu0 0.0
    %116 = vmatpush1.msra.mxu0 %v55
    %117 = vmatprep.subr.mxu0 0.0
    %118 = vmatpush1.msra.mxu0 %v54
    %119 = vmatprep.subr.mxu0 0.0
    %120 = vmatpush2.msra.mxu0 0.0
    %121 = vmatprep.subr.mxu0 0.0
    %122 = vmatpush2.msra.mxu0 0.0
    %123 = vmatprep.subr.mxu0 0.0
    %124 = vmatpush2.msra.mxu0 0.0
    %125 = vmatprep.subr.mxu0 0.0
    %126 = vmatpush2.msra.mxu0 0.0
    %127 = vmatprep.subr.mxu0 0.0
    %128 = vmatpush2.msra.mxu0 0.0
    %129 = vmatprep.subr.mxu0 0.0
    %130 = vmatpush2.msra.mxu0 0.0
    %131 = vmatprep.subr.mxu0 0.0
    %132 = vmatpush2.msra.mxu0 0.0
    %133 = vmatprep.subr.mxu0 0.0
    %134 = vmatpush2.msra.mxu0 0.0
    %135 = vmatprep.subr.mxu0 0.0
    %136 = vmatpush2.msra.mxu0 0.0
    %137 = vmatprep.subr.mxu0 0.0
    %138 = vmatpush2.msra.mxu0 0.0
    %139 = vmatprep.subr.mxu0 0.0
    %140 = vmatpush2.msra.mxu0 0.0
    %141 = vmatprep.subr.mxu0 0.0
    %142 = vmatpush2.msra.mxu0 0.0
    %143 = vmatprep.subr.mxu0 0.0
    %144 = vmatpush2.msra.mxu0 0.0
    %145 = vmatprep.subr.mxu0 0.0
    %146 = vmatpush2.msra.mxu0 0.0
    %147 = vmatprep.subr.mxu0 0.0
    %148 = vmatpush2.msra.mxu0 0.0
    %149 = vmatprep.subr.mxu0 0.0
    %150 = vmatpush2.msra.mxu0 0.0
    %151 = vmatprep.mubr.f32.mxu0 0.0
    %152 = vmatmul.mubr.f32.gmra.mxu0 %v86
    %v153 = vpop.f32.mrf.mxu0
    %v154 = vadd.f32 0.0, %v153
    %v155 = vpop.f32.mrf.mxu0
    %156 = vdwg.mxu0
    %vm157 = vcmp.gt.f32.partialorder %v154, 0.0
    %v158 = vmul.f32 %v154, 0.01
    %v159 = vsel %vm157, %v154, %v158
    %160 = vmatprep.subr.mxu0 0.0
    %161 = vmatpush1.msra.mxu0 %v85
    %162 = vmatprep.subr.mxu0 0.0
    %163 = vmatpush1.msra.mxu0 %v84
    %164 = vmatprep.subr.mxu0 0.0
    %165 = vmatpush1.msra.mxu0 %v83
    %166 = vmatprep.subr.mxu0 0.0
    %167 = vmatpush1.msra.mxu0 %v82
    %168 = vmatprep.subr.mxu0 0.0
    %169 = vmatpush1.msra.mxu0 %v81
    %170 = vmatprep.subr.mxu0 0.0
    %171 = vmatpush1.msra.mxu0 %v80
    %172 = vmatprep.subr.mxu0 0.0
    %173 = vmatpush1.msra.mxu0 %v79
    %174 = vmatprep.subr.mxu0 0.0
    %175 = vmatpush1.msra.mxu0 %v78
    %176 = vmatprep.subr.mxu0 0.0
    %177 = vmatpush1.msra.mxu0 %v77
    %178 = vmatprep.subr.mxu0 0.0
    %179 = vmatpush1.msra.mxu0 %v76
    %180 = vmatprep.subr.mxu0 0.0
    %181 = vmatpush1.msra.mxu0 %v75
    %182 = vmatprep.subr.mxu0 0.0
    %183 = vmatpush1.msra.mxu0 %v74
    %184 = vmatprep.subr.mxu0 0.0
    %185 = vmatpush1.msra.mxu0 %v73
    %186 = vmatprep.subr.mxu0 0.0
    %187 = vmatpush1.msra.mxu0 %v72
    %188 = vmatprep.subr.mxu0 0.0
    %189 = vmatpush1.msra.mxu0 %v71
    %190 = vmatprep.subr.mxu0 0.0
    %191 = vmatpush1.msra.mxu0 %v70
    %192 = vmatprep.subr.mxu0 0.0
    %193 = vmatpush2.msra.mxu0 0.0
    %194 = vmatprep.subr.mxu0 0.0
    %195 = vmatpush2.msra.mxu0 0.0
    %196 = vmatprep.subr.mxu0 0.0
    %197 = vmatpush2.msra.mxu0 0.0
    %198 = vmatprep.subr.mxu0 0.0
    %199 = vmatpush2.msra.mxu0 0.0
    %200 = vmatprep.subr.mxu0 0.0
    %201 = vmatpush2.msra.mxu0 0.0
    %202 = vmatprep.subr.mxu0 0.0
    %203 = vmatpush2.msra.mxu0 0.0
    %204 = vmatprep.subr.mxu0 0.0
    %205 = vmatpush2.msra.mxu0 0.0
    %206 = vmatprep.subr.mxu0 0.0
    %207 = vmatpush2.msra.mxu0 0.0
    %208 = vmatprep.subr.mxu0 0.0
    %209 = vmatpush2.msra.mxu0 0.0
    %210 = vmatprep.subr.mxu0 0.0
    %211 = vmatpush2.msra.mxu0 0.0
    %212 = vmatprep.subr.mxu0 0.0
    %213 = vmatpush2.msra.mxu0 0.0
    %214 = vmatprep.subr.mxu0 0.0
    %215 = vmatpush2.msra.mxu0 0.0
    %216 = vmatprep.subr.mxu0 0.0
    %217 = vmatpush2.msra.mxu0 0.0
    %218 = vmatprep.subr.mxu0 0.0
    %219 = vmatpush2.msra.mxu0 0.0
    %220 = vmatprep.subr.mxu0 0.0
    %221 = vmatpush2.msra.mxu0 0.0
    %222 = vmatprep.subr.mxu0 0.0
    %223 = vmatpush2.msra.mxu0 0.0
    %224 = vmatprep.mubr.f32.mxu0 0.0
    %225 = vmatmul.mubr.f32.gmra.mxu0 %v159
    %v226 = vpop.f32.mrf.mxu0
    %v227 = vadd.f32 0.0, %v226
    %v228 = vpop.f32.mrf.mxu0
    %229 = vdwg.mxu0
    %vm230 = vcmp.gt.f32.partialorder %v227, 0.0
    %v231 = vmul.f32 %v227, 0.01
    %v232 = vsel %vm230, %v227, %v231
    %233 = vst [vmem:[#allocation8] sm:$0xff] %v232
    // Predicated region
    $region26: #{tpu_custom_call.1} parent=1 // pred_check
      _
    $region27: #{tpu_custom_call.1} parent=1 // pred_check_branch
      %235 = sbr.rel (0) target = $region29
    $region28: #{tpu_custom_call.1} parent=1 // pred_region
      %s237 = ssub.s32 128, 128
      %238 = vsyncadd [#allocation4], %s237
      %s240 = sshll.u32 [#allocation8], 4
      %s241 = int_to_ptr.vmem [resolvable:$true] %s240
      %243 = dma.vmem_to_hbm [thread:$0]  %s241, 128, %s3, [#allocation4]
    $region29: #{tpu_custom_call.1} parent=1 // pred_fallthru
      _
    // Predicated region
    $region30: #{tpu_custom_call.1} parent=1 // pred_check
      _
    $region31: #{tpu_custom_call.1} parent=1 // pred_check_branch
      %245 = sbr.rel (0) target = $region33
    $region32: #{tpu_custom_call.1} parent=1 // pred_region
      %246 = dma.done [#allocation4], 128
    $region33: #{tpu_custom_call.1} parent=1 // pred_fallthru
      _
    %247 = vsyncpa [#allocation3], 1
    %248 = vsyncpa [#allocation6], 1
    %249 = vsyncpa [#allocation4], 1

</llo_original>
